<compile_context>
chip_gen: v7x
topology: tpu7x:2x2x1
jax: 0.10.0
libtpu: 0.0.40
codegen_flags: <defaults>
</compile_context>

<pallas_src>
import math

import jax
import jax.numpy as jnp
from jax import lax
from jax.experimental import pallas as pl
from jax.experimental.pallas import tpu as pltpu

PAD = 128  # padded output-lane width for each of the q/k/v projections


def _attn_kernel(q_ref, k_ref, v_ref, w_ref, o_ref):
    # Blocks (batch dim squeezed): q/k/v_ref (S, D); w_ref (D, 3*PAD);
    # o_ref (S, PAD).  Lane-aligned static slices of the packed weight.
    wq = w_ref[:, 0:PAD]            # scale 1/sqrt(d_model) already folded in
    wk = w_ref[:, PAD:2 * PAD]
    wv = w_ref[:, 2 * PAD:3 * PAD]

    # Projections (bias=False), f32 accumulation on the MXU; outputs are
    # lane-dense (S, 128) with zero tail columns.
    q = jnp.dot(q_ref[...], wq, preferred_element_type=jnp.float32)
    k = jnp.dot(k_ref[...], wk, preferred_element_type=jnp.float32)
    v = jnp.dot(v_ref[...], wv, preferred_element_type=jnp.float32)

    # Scores q @ k^T without materializing k.T (contract last dims directly).
    # Zero-padded columns of q/k contribute nothing.
    s = lax.dot_general(
        q, k,
        dimension_numbers=(((1,), (1,)), ((), ())),
        preferred_element_type=jnp.float32,
    )

    # Numerically stable softmax over the key dim, reusing `s` in place.
    s = s - jnp.max(s, axis=-1, keepdims=True)
    s = jnp.exp(s)
    denom_inv = 1.0 / jnp.sum(s, axis=-1, keepdims=True)   # exact f32
    s = s * denom_inv

    # Dropout is identity (eval / p=0.0); attn_mask never applied (matches ref).
    # p @ v_pad -> (S, 128) lane-dense store (real data in the first 64 lanes).
    o_ref[...] = jnp.dot(s, v, preferred_element_type=jnp.float32).astype(o_ref.dtype)


def pack_qkv_weights(wq, wk, wv, d_model):
    """Pack (D, D) weights (laid out for x @ W) into one (D, 3*PAD) array.

    Each projection is zero-padded from D to PAD output lanes; the softmax
    scale 1/sqrt(d_model) is folded into the Wq columns.
    """
    d_in, d_out = wq.shape
    assert d_out <= PAD

    def pad_cols(w):
        return jnp.pad(w, ((0, 0), (0, PAD - d_out)))

    inv_scale = 1.0 / math.sqrt(d_model)
    return jnp.concatenate(
        [pad_cols(wq * inv_scale), pad_cols(wk), pad_cols(wv)], axis=1)


def attention_forward(query, key, value, w_packed, *, d_out):
    """query/key/value: (B, S, D); w_packed: (D, 3*PAD) from pack_qkv_weights."""
    B, S, D = query.shape
    assert w_packed.shape == (D, 3 * PAD)
    assert S % 8 == 0

    # Single grid step per batch element: the whole problem fits VMEM trivially
    # on every generation (v5e/v6e/v7x), so no query-row split / no K/V recompute.
    x_spec = pl.BlockSpec((None, S, D), lambda b: (b, 0, 0))
    w_spec = pl.BlockSpec((D, 3 * PAD), lambda b: (0, 0))
    o_spec = pl.BlockSpec((None, S, PAD), lambda b: (b, 0, 0))

    out_padded = pl.pallas_call(
        _attn_kernel,
        out_shape=jax.ShapeDtypeStruct((B, S, PAD), query.dtype),
        grid_spec=pltpu.PrefetchScalarGridSpec(
            num_scalar_prefetch=0,
            grid=(B,),
            in_specs=[x_spec, x_spec, x_spec, w_spec],
            out_specs=o_spec,
        ),
        compiler_params=pltpu.CompilerParams(
            dimension_semantics=("parallel",)),
    )(query, key, value, w_packed)

    # Lane-dense kernel store; trim the zero padding here (32 KiB, noise).
    return out_padded[..., :d_out]


def reference_forward(query, key, value, wq, wk, wv, d_model):
    hp = lax.Precision.HIGHEST  # match the kernel's full-f32 MXU arithmetic
    q = jnp.matmul(query, wq, precision=hp)
    k = jnp.matmul(key, wk, precision=hp)
    v = jnp.matmul(value, wv, precision=hp)
    s = jnp.einsum("bqd,bkd->bqk", q, k, precision=hp) / math.sqrt(d_model)
    p = jax.nn.softmax(s, axis=-1)
    return jnp.einsum("bqk,bkd->bqd", p, v, precision=hp)


if __name__ == "__main__":
    # Shapes consistent with the module usage: d_model=64, seq=128, batch=1.
    B, S, D = 1, 128, 64
    n_head = 4  # only used for the (never-applied) mask repeat; no head split.

    key0 = jax.random.PRNGKey(0)
    k_q, k_k, k_v, k_wq, k_wk, k_wv = jax.random.split(key0, 6)

    query = jax.random.normal(k_q, (B, S, D), dtype=jnp.float32)
    key_t = jax.random.normal(k_k, (B, S, D), dtype=jnp.float32)
    value = jax.random.normal(k_v, (B, S, D), dtype=jnp.float32)

    # Deterministic Linear weights (bias=False), stored as (D_in, D_out) so the
    # kernel computes x @ W directly (equivalent to PyTorch's x @ W^T layout).
    bound = 1.0 / math.sqrt(D)
    wq = jax.random.uniform(k_wq, (D, D), jnp.float32, -bound, bound)
    wk = jax.random.uniform(k_wk, (D, D), jnp.float32, -bound, bound)
    wv = jax.random.uniform(k_wv, (D, D), jnp.float32, -bound, bound)

    # One-time weight packing (scale folded into Wq, 128-lane zero padding).
    w_packed = pack_qkv_weights(wq, wk, wv, d_model=D)

    out = attention_forward(query, key_t, value, w_packed, d_out=D)
    out = jax.block_until_ready(out)

    ref = reference_forward(query, key_t, value, wq, wk, wv, d_model=D)
    assert out.shape == (B, S, D)
    assert jnp.allclose(out, ref, atol=1e-3, rtol=1e-3), (
        float(jnp.max(jnp.abs(out - ref))))

    print("KERNEL_OK")
</pallas_src>

<mosaic_0001>
module attributes {stable_mosaic.version = 11 : i64} {
  func.func @_attn_kernel(%arg0: i32, %arg1: memref<1x128x64xf32, #tpu.memory_space<vmem>>, %arg2: memref<1x128x64xf32, #tpu.memory_space<vmem>>, %arg3: memref<1x128x64xf32, #tpu.memory_space<vmem>>, %arg4: memref<64x384xf32, #tpu.memory_space<vmem>>, %arg5: memref<1x128x128xf32, #tpu.memory_space<vmem>>) attributes {dimension_semantics = [#tpu.dimension_semantics<parallel>], iteration_bounds = array<i64: 1>, scalar_prefetch = 0 : i64, scratch_operands = 0 : i64, tpu.core_type = #tpu.core_type<tc>, window_params = [{transform_indices = @transform_0, window_bounds = array<i64: 1, 128, 64>}, {transform_indices = @transform_1, window_bounds = array<i64: 1, 128, 64>}, {transform_indices = @transform_2, window_bounds = array<i64: 1, 128, 64>}, {pipeline_mode = #tpu.pipeline_mode<synchronous>, transform_indices = @transform_3, window_bounds = array<i64: 64, 384>}, {transform_indices = @transform_4, window_bounds = array<i64: 1, 128, 128>}]} {
    %c0 = arith.constant 0 : index
    %c0_0 = arith.constant 0 : index
    %0 = vector.load %arg4[%c0, %c0_0] : memref<64x384xf32, #tpu.memory_space<vmem>>, vector<64x128xf32>
    %c0_1 = arith.constant 0 : index
    %c128 = arith.constant 128 : index
    %1 = vector.load %arg4[%c0_1, %c128] : memref<64x384xf32, #tpu.memory_space<vmem>>, vector<64x128xf32>
    %c0_2 = arith.constant 0 : index
    %c256 = arith.constant 256 : index
    %2 = vector.load %arg4[%c0_2, %c256] : memref<64x384xf32, #tpu.memory_space<vmem>>, vector<64x128xf32>
    %c0_3 = arith.constant 0 : index
    %c0_4 = arith.constant 0 : index
    %c0_5 = arith.constant 0 : index
    %3 = vector.load %arg1[%c0_3, %c0_4, %c0_5] : memref<1x128x64xf32, #tpu.memory_space<vmem>>, vector<1x128x64xf32>
    %4 = vector.shape_cast %3 : vector<1x128x64xf32> to vector<128x64xf32>
    %cst = arith.constant dense<0.000000e+00> : vector<128x128xf32>
    %5 = tpu.matmul %4, %0, %cst {dimension_numbers = #tpu.dot_dimension_numbers<[1], [0], [0], [1], [0, 0, 1, 1], [], []>} : vector<128x64xf32>, vector<64x128xf32>, vector<128x128xf32> -> vector<128x128xf32>
    %c0_6 = arith.constant 0 : index
    %c0_7 = arith.constant 0 : index
    %c0_8 = arith.constant 0 : index
    %6 = vector.load %arg2[%c0_6, %c0_7, %c0_8] : memref<1x128x64xf32, #tpu.memory_space<vmem>>, vector<1x128x64xf32>
    %7 = vector.shape_cast %6 : vector<1x128x64xf32> to vector<128x64xf32>
    %cst_9 = arith.constant dense<0.000000e+00> : vector<128x128xf32>
    %8 = tpu.matmul %7, %1, %cst_9 {dimension_numbers = #tpu.dot_dimension_numbers<[1], [0], [0], [1], [0, 0, 1, 1], [], []>} : vector<128x64xf32>, vector<64x128xf32>, vector<128x128xf32> -> vector<128x128xf32>
    %c0_10 = arith.constant 0 : index
    %c0_11 = arith.constant 0 : index
    %c0_12 = arith.constant 0 : index
    %9 = vector.load %arg3[%c0_10, %c0_11, %c0_12] : memref<1x128x64xf32, #tpu.memory_space<vmem>>, vector<1x128x64xf32>
    %10 = vector.shape_cast %9 : vector<1x128x64xf32> to vector<128x64xf32>
    %cst_13 = arith.constant dense<0.000000e+00> : vector<128x128xf32>
    %11 = tpu.matmul %10, %2, %cst_13 {dimension_numbers = #tpu.dot_dimension_numbers<[1], [0], [0], [1], [0, 0, 1, 1], [], []>} : vector<128x64xf32>, vector<64x128xf32>, vector<128x128xf32> -> vector<128x128xf32>
    %cst_14 = arith.constant dense<0.000000e+00> : vector<128x128xf32>
    %12 = tpu.matmul %5, %8, %cst_14 {dimension_numbers = #tpu.dot_dimension_numbers<[1], [1], [0], [0], [0, 0, 1, 0], [], []>} : vector<128x128xf32>, vector<128x128xf32>, vector<128x128xf32> -> vector<128x128xf32>
    %cst_15 = arith.constant dense<0xFF800000> : vector<128xf32>
    %13 = vector.multi_reduction <maximumf>, %12, %cst_15 [1] : vector<128x128xf32> to vector<128xf32>
    %14 = vector.shape_cast %13 : vector<128xf32> to vector<128x1xf32>
    %15 = vector.broadcast %14 : vector<128x1xf32> to vector<128x128xf32>
    %16 = arith.subf %12, %15 : vector<128x128xf32>
    %17 = math.exp %16 : vector<128x128xf32>
    %cst_16 = arith.constant dense<0.000000e+00> : vector<128xf32>
    %18 = vector.multi_reduction <add>, %17, %cst_16 [1] : vector<128x128xf32> to vector<128xf32>
    %19 = vector.shape_cast %18 : vector<128xf32> to vector<128x1xf32>
    %cst_17 = arith.constant 1.000000e+00 : f32
    %20 = vector.broadcast %cst_17 : f32 to vector<128x1xf32>
    %21 = arith.divf %20, %19 : vector<128x1xf32>
    %22 = vector.broadcast %21 : vector<128x1xf32> to vector<128x128xf32>
    %23 = arith.mulf %17, %22 : vector<128x128xf32>
    %cst_18 = arith.constant dense<0.000000e+00> : vector<128x128xf32>
    %24 = tpu.matmul %23, %11, %cst_18 {dimension_numbers = #tpu.dot_dimension_numbers<[1], [0], [0], [1], [0, 0, 1, 1], [], []>} : vector<128x128xf32>, vector<128x128xf32>, vector<128x128xf32> -> vector<128x128xf32>
    %c0_19 = arith.constant 0 : index
    %c0_20 = arith.constant 0 : index
    %c0_21 = arith.constant 0 : index
    %25 = vector.load %arg5[%c0_19, %c0_20, %c0_21] : memref<1x128x128xf32, #tpu.memory_space<vmem>>, vector<1x128x128xf32>
    %26 = vector.shape_cast %25 : vector<1x128x128xf32> to vector<128x128xf32>
    %27 = vector.shape_cast %24 : vector<128x128xf32> to vector<1x128x128xf32>
    tpu.vector_store %arg5[%c0_19, %c0_20, %c0_21], %27 {strides = array<i32>} : memref<1x128x128xf32, #tpu.memory_space<vmem>>, vector<1x128x128xf32>,
    return
  }
  func.func @transform_0(%arg0: i32) -> (i32, i32, i32) {
    %c0_i32 = arith.constant 0 : i32
    %c0_i32_0 = arith.constant 0 : i32
    %c0_i32_1 = arith.constant 0 : i32
    return %arg0, %c0_i32, %c0_i32_0 : i32, i32, i32
  }
  func.func @transform_1(%arg0: i32) -> (i32, i32, i32) {
    %c0_i32 = arith.constant 0 : i32
    %c0_i32_0 = arith.constant 0 : i32
    %c0_i32_1 = arith.constant 0 : i32
    return %arg0, %c0_i32, %c0_i32_0 : i32, i32, i32
  }
  func.func @transform_2(%arg0: i32) -> (i32, i32, i32) {
    %c0_i32 = arith.constant 0 : i32
    %c0_i32_0 = arith.constant 0 : i32
    %c0_i32_1 = arith.constant 0 : i32
    return %arg0, %c0_i32, %c0_i32_0 : i32, i32, i32
  }
  func.func @transform_3(%arg0: i32) -> (i32, i32) {
    %c0_i32 = arith.constant 0 : i32
    %c0_i32_0 = arith.constant 0 : i32
    %c0_i32_1 = arith.constant 0 : i32
    return %c0_i32, %c0_i32_0 : i32, i32
  }
  func.func @transform_4(%arg0: i32) -> (i32, i32, i32) {
    %c0_i32 = arith.constant 0 : i32
    %c0_i32_0 = arith.constant 0 : i32
    %c0_i32_1 = arith.constant 0 : i32
    return %arg0, %c0_i32, %c0_i32_0 : i32, i32, i32
  }
}

</mosaic_0001>

<llo_original>
// kernel: tpu_custom_call.1
$region0: #{tpu_custom_call.1}
  #allocation0 [shape = 'u32[]', space=smem, size = 0x4, offset = 0x4, fixed_abs, tag = 'smem constant byte address 0x4 - core index']
  #allocation1 [shape = 'u32[144,128]{1,0:T(1,128)}', space=vmem, size = 0x12000, scoped, tag = 'internal scratch']
  %s0 = inlined_call_operand.vmem [shape: f32[1,128,64], index: 0, kind: input, shape index: {}]
  %s1 = inlined_call_operand.vmem [shape: f32[1,128,64], index: 1, kind: input, shape index: {}]
  %s2 = inlined_call_operand.vmem [shape: f32[1,128,64], index: 2, kind: input, shape index: {}]
  %s3 = inlined_call_operand.vmem [shape: f32[64,384], index: 3, kind: input, shape index: {}]
  %s4 = inlined_call_operand.hbm [shape: f32[1,128,128], index: 4, kind: output, shape index: {}]
  %s5 = sld [smem:[#allocation0]]
  $region26: #{tpu_custom_call.1} parent=0
    _
  %s7 = ssub.s32 1, %s5
  %s8 = scalar_select 0, %s7, %s5
  $region1: #{tpu_custom_call.1} parent=0
    #allocation2 [shape = 'u8[65536]{0}', space=vmem, size = 0x10000, scoped, tag = 'output window, operand 0, single buffered']
    #allocation3 [shape = 's32[1]{0}', space=sflag, size = 0x4, scoped, tag = 'scoped memory for tpu_custom_call.1']
    %9 = vsyncpa [#allocation3], 0
    // Predicated region
    $region2: #{tpu_custom_call.1} parent=1 // pred_check
      _
    $region3: #{tpu_custom_call.1} parent=1 // pred_check_branch
      %11 = sbr.rel (0) target = $region5
    $region4: #{tpu_custom_call.1} parent=1 // pred_region
      _
    $region5: #{tpu_custom_call.1} parent=1 // pred_fallthru
      _
    // Predicated region
    $region6: #{tpu_custom_call.1} parent=1 // pred_check
      _
    $region7: #{tpu_custom_call.1} parent=1 // pred_check_branch
      %13 = sbr.rel (0) target = $region9
    $region8: #{tpu_custom_call.1} parent=1 // pred_region
      _
    $region9: #{tpu_custom_call.1} parent=1 // pred_fallthru
      _
    // Predicated region
    $region10: #{tpu_custom_call.1} parent=1 // pred_check
      _
    $region11: #{tpu_custom_call.1} parent=1 // pred_check_branch
      %15 = sbr.rel (0) target = $region13
    $region12: #{tpu_custom_call.1} parent=1 // pred_region
      _
    $region13: #{tpu_custom_call.1} parent=1 // pred_fallthru
      _
    // Predicated region
    $region14: #{tpu_custom_call.1} parent=1 // pred_check
      _
    $region15: #{tpu_custom_call.1} parent=1 // pred_check_branch
      %17 = sbr.rel (0) target = $region17
    $region16: #{tpu_custom_call.1} parent=1 // pred_region
      _
    $region17: #{tpu_custom_call.1} parent=1 // pred_fallthru
      _
    %v18 = vld [vmem:[%s3] sm:$0xff]
    %v19 = vld [vmem:[%s3 + $0x18] sm:$0xff]
    %v20 = vld [vmem:[%s3 + $0x30] sm:$0xff]
    %v21 = vld [vmem:[%s3 + $0x48] sm:$0xff]
    %v22 = vld [vmem:[%s3 + $0x60] sm:$0xff]
    %v23 = vld [vmem:[%s3 + $0x78] sm:$0xff]
    %v24 = vld [vmem:[%s3 + $0x90] sm:$0xff]
    %v25 = vld [vmem:[%s3 + $0xa8] sm:$0xff]
    %v26 = vld [vmem:[%s3 + $0x8] sm:$0xff]
    %v27 = vld [vmem:[%s3 + $0x20] sm:$0xff]
    %v28 = vld [vmem:[%s3 + $0x38] sm:$0xff]
    %v29 = vld [vmem:[%s3 + $0x50] sm:$0xff]
    %v30 = vld [vmem:[%s3 + $0x68] sm:$0xff]
    %v31 = vld [vmem:[%s3 + $0x80] sm:$0xff]
    %v32 = vld [vmem:[%s3 + $0x98] sm:$0xff]
    %v33 = vld [vmem:[%s3 + $0xb0] sm:$0xff]
    %v34 = vld [vmem:[%s3 + $0x10] sm:$0xff]
    %v35 = vld [vmem:[%s3 + $0x28] sm:$0xff]
    %v36 = vld [vmem:[%s3 + $0x40] sm:$0xff]
    %v37 = vld [vmem:[%s3 + $0x58] sm:$0xff]
    %v38 = vld [vmem:[%s3 + $0x70] sm:$0xff]
    %v39 = vld [vmem:[%s3 + $0x88] sm:$0xff]
    %v40 = vld [vmem:[%s3 + $0xa0] sm:$0xff]
    %v41 = vld [vmem:[%s3 + $0xb8] sm:$0xff]
    %v42 = vld [vmem:[%s0] sm:$0xff]
    %v43 = vld [vmem:[%s0 + $0x8] sm:$0xff]
    %v44 = vld [vmem:[%s0 + $0x10] sm:$0xff]
    %v45 = vld [vmem:[%s0 + $0x18] sm:$0xff]
    %v46 = vld [vmem:[%s0 + $0x20] sm:$0xff]
    %v47 = vld [vmem:[%s0 + $0x28] sm:$0xff]
    %v48 = vld [vmem:[%s0 + $0x30] sm:$0xff]
    %v49 = vld [vmem:[%s0 + $0x38] sm:$0xff]
    %v50 = vld [vmem:[%s0 + $0x40] sm:$0xff]
    %v51 = vld [vmem:[%s0 + $0x48] sm:$0xff]
    %v52 = vld [vmem:[%s0 + $0x50] sm:$0xff]
    %v53 = vld [vmem:[%s0 + $0x58] sm:$0xff]
    %v54 = vld [vmem:[%s0 + $0x60] sm:$0xff]
    %v55 = vld [vmem:[%s0 + $0x68] sm:$0xff]
    %v56 = vld [vmem:[%s0 + $0x70] sm:$0xff]
    %v57 = vld [vmem:[%s0 + $0x78] sm:$0xff]
    %vm58 = vcmask 523264
    %v60 = vsel %vm58, %v42, 0
    %v63 = vsel %vm58, %v43, 0
    %v66 = vsel %vm58, %v44, 0
    %v69 = vsel %vm58, %v45, 0
    %v72 = vsel %vm58, %v46, 0
    %v75 = vsel %vm58, %v47, 0
    %v78 = vsel %vm58, %v48, 0
    %v81 = vsel %vm58, %v49, 0
    %v84 = vsel %vm58, %v50, 0
    %v87 = vsel %vm58, %v51, 0
    %v90 = vsel %vm58, %v52, 0
    %v93 = vsel %vm58, %v53, 0
    %v96 = vsel %vm58, %v54, 0
    %v99 = vsel %vm58, %v55, 0
    %v102 = vsel %vm58, %v56, 0
    %v105 = vsel %vm58, %v57, 0
    %107 = vmatprep.subr.mxu0 0.0
    %108 = vmatpush1.msra.mxu0 %v18
    %109 = vmatprep.subr.mxu0 0.0
    %110 = vmatpush1.msra.mxu0 %v19
    %111 = vmatprep.subr.mxu0 0.0
    %112 = vmatpush1.msra.mxu0 %v20
    %113 = vmatprep.subr.mxu0 0.0
    %114 = vmatpush1.msra.mxu0 %v21
    %115 = vmatprep.subr.mxu0 0.0
    %116 = vmatpush1.msra.mxu0 %v22
    %117 = vmatprep.subr.mxu0 0.0
    %118 = vmatpush1.msra.mxu0 %v23
    %119 = vmatprep.subr.mxu0 0.0
    %120 = vmatpush1.msra.mxu0 %v24
    %121 = vmatprep.subr.mxu0 0.0
    %122 = vmatpush1.msra.mxu0 %v25
    %123 = vmatprep.subr.mxu0 0.0
    %124 = vmatpush1.msra.mxu0 0.0
    %125 = vmatprep.subr.mxu0 0.0
    %126 = vmatpush1.msra.mxu0 0.0
    %127 = vmatprep.subr.mxu0 0.0
    %128 = vmatpush1.msra.mxu0 0.0
    %129 = vmatprep.subr.mxu0 0.0
    %130 = vmatpush1.msra.mxu0 0.0
    %131 = vmatprep.subr.mxu0 0.0
    %132 = vmatpush1.msra.mxu0 0.0
    %133 = vmatprep.subr.mxu0 0.0
    %134 = vmatpush1.msra.mxu0 0.0
    %135 = vmatprep.subr.mxu0 0.0
    %136 = vmatpush1.msra.mxu0 0.0
    %137 = vmatprep.subr.mxu0 0.0
    %138 = vmatpush1.msra.mxu0 0.0
    %139 = vmatprep.subr.mxu0 0.0
    %140 = vmatpush1.msra.mxu0 0.0
    %141 = vmatprep.subr.mxu0 0.0
    %142 = vmatpush1.msra.mxu0 0.0
    %143 = vmatprep.subr.mxu0 0.0
    %144 = vmatpush1.msra.mxu0 0.0
    %145 = vmatprep.subr.mxu0 0.0
    %146 = vmatpush1.msra.mxu0 0.0
    %147 = vmatprep.subr.mxu0 0.0
    %148 = vmatpush1.msra.mxu0 0.0
    %149 = vmatprep.subr.mxu0 0.0
    %150 = vmatpush1.msra.mxu0 0.0
    %151 = vmatprep.subr.mxu0 0.0
    %152 = vmatpush1.msra.mxu0 0.0
    %153 = vmatprep.subr.mxu0 0.0
    %154 = vmatpush1.msra.mxu0 0.0
    %155 = vmatprep.subr.mxu0 0.0
    %156 = vmatpush1.msra.mxu0 0.0
    %157 = vmatprep.subr.mxu0 0.0
    %158 = vmatpush1.msra.mxu0 0.0
    %159 = vmatprep.subr.mxu0 0.0
    %160 = vmatpush1.msra.mxu0 0.0
    %161 = vmatprep.subr.mxu0 0.0
    %162 = vmatpush1.msra.mxu0 0.0
    %163 = vmatprep.subr.mxu0 0.0
    %164 = vmatpush1.msra.mxu0 0.0
    %165 = vmatprep.subr.mxu0 0.0
    %166 = vmatpush1.msra.mxu0 0.0
    %167 = vmatprep.subr.mxu0 0.0
    %168 = vmatpush1.msra.mxu0 0.0
    %169 = vmatprep.subr.mxu0 0.0
    %170 = vmatpush1.msra.mxu0 0.0
    %171 = vmatprep.mubr.f32.mxu0 0.0
    %172 = vmatmul.mubr.f32.gmra.mrb[0].mxu0 %v60
    %v173 = vpop.f32.mrb[0].mxu0
    %v174 = vadd.f32 0.0, %v173
    %v175 = vpop.f32.mrb[0].mxu0
    %176 = vmatprep.mubr.f32.mxu0 0.0
    %177 = vmatmul.mubr.f32.gmra.mrb[0].mxu0 %v63
    %v178 = vpop.f32.mrb[0].mxu0
    %v179 = vadd.f32 0.0, %v178
    %v180 = vpop.f32.mrb[0].mxu0
    %181 = vmatprep.mubr.f32.mxu0 0.0
    %182 = vmatmul.mubr.f32.gmra.mrb[0].mxu0 %v66
    %v183 = vpop.f32.mrb[0].mxu0
    %v184 = vadd.f32 0.0, %v183
    %v185 = vpop.f32.mrb[0].mxu0
    %186 = vmatprep.mubr.f32.mxu0 0.0
    %187 = vmatmul.mubr.f32.gmra.mrb[0].mxu0 %v69
    %v188 = vpop.f32.mrb[0].mxu0
    %v189 = vadd.f32 0.0, %v188
    %v190 = vpop.f32.mrb[0].mxu0
    %191 = vmatprep.mubr.f32.mxu0 0.0
    %192 = vmatmul.mubr.f32.gmra.mrb[0].mxu0 %v72
    %v193 = vpop.f32.mrb[0].mxu0
    %v194 = vadd.f32 0.0, %v193
    %v195 = vpop.f32.mrb[0].mxu0
    %196 = vmatprep.mubr.f32.mxu0 0.0
    %197 = vmatmul.mubr.f32.gmra.mrb[0].mxu0 %v75
    %v198 = vpop.f32.mrb[0].mxu0
    %v199 = vadd.f32 0.0, %v198
    %v200 = vpop.f32.mrb[0].mxu0
    %201 = vmatprep.mubr.f32.mxu0 0.0
    %202 = vmatmul.mubr.f32.gmra.mrb[0].mxu0 %v78
    %v203 = vpop.f32.mrb[0].mxu0
    %v204 = vadd.f32 0.0, %v203
    %v205 = vpop.f32.mrb[0].mxu0
    %206 = vmatprep.mubr.f32.mxu0 0.0
    %207 = vmatmul.mubr.f32.gmra.mrb[0].mxu0 %v81
    %v208 = vpop.f32.mrb[0].mxu0
    %v209 = vadd.f32 0.0, %v208
    %v210 = vpop.f32.mrb[0].mxu0
    %211 = vmatprep.mubr.f32.mxu0 0.0
    %212 = vmatmul.mubr.f32.gmra.mrb[0].mxu0 %v84
    %v213 = vpop.f32.mrb[0].mxu0
    %v214 = vadd.f32 0.0, %v213
    %v215 = vpop.f32.mrb[0].mxu0
    %216 = vmatprep.mubr.f32.mxu0 0.0
    %217 = vmatmul.mubr.f32.gmra.mrb[0].mxu0 %v87
    %v218 = vpop.f32.mrb[0].mxu0
    %v219 = vadd.f32 0.0, %v218
    %v220 = vpop.f32.mrb[0].mxu0
    %221 = vmatprep.mubr.f32.mxu0 0.0
    %222 = vmatmul.mubr.f32.gmra.mrb[0].mxu0 %v90
    %v223 = vpop.f32.mrb[0].mxu0
    %v224 = vadd.f32 0.0, %v223
    %v225 = vpop.f32.mrb[0].mxu0
    %226 = vmatprep.mubr.f32.mxu0 0.0
    %227 = vmatmul.mubr.f32.gmra.mrb[0].mxu0 %v93
    %v228 = vpop.f32.mrb[0].mxu0
    %v229 = vadd.f32 0.0, %v228
    %v230 = vpop.f32.mrb[0].mxu0
    %231 = vmatprep.mubr.f32.mxu0 0.0
    %232 = vmatmul.mubr.f32.gmra.mrb[0].mxu0 %v96
    %v233 = vpop.f32.mrb[0].mxu0
    %v234 = vadd.f32 0.0, %v233
    %v235 = vpop.f32.mrb[0].mxu0
    %236 = vmatprep.mubr.f32.mxu0 0.0
    %237 = vmatmul.mubr.f32.gmra.mrb[0].mxu0 %v99
    %v238 = vpop.f32.mrb[0].mxu0
    %v239 = vadd.f32 0.0, %v238
    %v240 = vpop.f32.mrb[0].mxu0
    %241 = vmatprep.mubr.f32.mxu0 0.0
    %242 = vmatmul.mubr.f32.gmra.mrb[0].mxu0 %v102
    %v243 = vpop.f32.mrb[0].mxu0
    %v244 = vadd.f32 0.0, %v243
    %v245 = vpop.f32.mrb[0].mxu0
    %246 = vmatprep.mubr.f32.mxu0 0.0
    %247 = vmatmul.mubr.f32.gmra.mrb[0].mxu0 %v105
    %v248 = vpop.f32.mrb[0].mxu0
    %v249 = vadd.f32 0.0, %v248
    %v250 = vpop.f32.mrb[0].mxu0
    %251 = vdwg.mxu0
    %v252 = vld [vmem:[%s1] sm:$0xff]
    %v253 = vld [vmem:[%s1 + $0x8] sm:$0xff]
    %v254 = vld [vmem:[%s1 + $0x10] sm:$0xff]
    %v255 = vld [vmem:[%s1 + $0x18] sm:$0xff]
    %v256 = vld [vmem:[%s1 + $0x20] sm:$0xff]
    %v257 = vld [vmem:[%s1 + $0x28] sm:$0xff]
    %v258 = vld [vmem:[%s1 + $0x30] sm:$0xff]
    %v259 = vld [vmem:[%s1 + $0x38] sm:$0xff]
    %v260 = vld [vmem:[%s1 + $0x40] sm:$0xff]
    %v261 = vld [vmem:[%s1 + $0x48] sm:$0xff]
    %v262 = vld [vmem:[%s1 + $0x50] sm:$0xff]
    %v263 = vld [vmem:[%s1 + $0x58] sm:$0xff]
    %v264 = vld [vmem:[%s1 + $0x60] sm:$0xff]
    %v265 = vld [vmem:[%s1 + $0x68] sm:$0xff]
    %v266 = vld [vmem:[%s1 + $0x70] sm:$0xff]
    %v267 = vld [vmem:[%s1 + $0x78] sm:$0xff]
    %v269 = vsel %vm58, %v252, 0
    %v272 = vsel %vm58, %v253, 0
    %v275 = vsel %vm58, %v254, 0
    %v278 = vsel %vm58, %v255, 0
    %v281 = vsel %vm58, %v256, 0
    %v284 = vsel %vm58, %v257, 0
    %v287 = vsel %vm58, %v258, 0
    %v290 = vsel %vm58, %v259, 0
    %v293 = vsel %vm58, %v260, 0
    %v296 = vsel %vm58, %v261, 0
    %v299 = vsel %vm58, %v262, 0
    %v302 = vsel %vm58, %v263, 0
    %v305 = vsel %vm58, %v264, 0
    %v308 = vsel %vm58, %v265, 0
    %v311 = vsel %vm58, %v266, 0
    %v314 = vsel %vm58, %v267, 0
    %316 = vmatprep.subr.mxu0 0.0
    %317 = vmatpush1.msra.mxu0 %v26
    %318 = vmatprep.subr.mxu0 0.0
    %319 = vmatpush1.msra.mxu0 %v27
    %320 = vmatprep.subr.mxu0 0.0
    %321 = vmatpush1.msra.mxu0 %v28
    %322 = vmatprep.subr.mxu0 0.0
    %323 = vmatpush1.msra.mxu0 %v29
    %324 = vmatprep.subr.mxu0 0.0
    %325 = vmatpush1.msra.mxu0 %v30
    %326 = vmatprep.subr.mxu0 0.0
    %327 = vmatpush1.msra.mxu0 %v31
    %328 = vmatprep.subr.mxu0 0.0
    %329 = vmatpush1.msra.mxu0 %v32
    %330 = vmatprep.subr.mxu0 0.0
    %331 = vmatpush1.msra.mxu0 %v33
    %332 = vmatprep.subr.mxu0 0.0
    %333 = vmatpush1.msra.mxu0 0.0
    %334 = vmatprep.subr.mxu0 0.0
    %335 = vmatpush1.msra.mxu0 0.0
    %336 = vmatprep.subr.mxu0 0.0
    %337 = vmatpush1.msra.mxu0 0.0
    %338 = vmatprep.subr.mxu0 0.0
    %339 = vmatpush1.msra.mxu0 0.0
    %340 = vmatprep.subr.mxu0 0.0
    %341 = vmatpush1.msra.mxu0 0.0
    %342 = vmatprep.subr.mxu0 0.0
    %343 = vmatpush1.msra.mxu0 0.0
    %344 = vmatprep.subr.mxu0 0.0
    %345 = vmatpush1.msra.mxu0 0.0
    %346 = vmatprep.subr.mxu0 0.0
    %347 = vmatpush1.msra.mxu0 0.0
    %348 = vmatprep.subr.mxu0 0.0
    %349 = vmatpush1.msra.mxu0 0.0
    %350 = vmatprep.subr.mxu0 0.0
    %351 = vmatpush1.msra.mxu0 0.0
    %352 = vmatprep.subr.mxu0 0.0
    %353 = vmatpush1.msra.mxu0 0.0
    %354 = vmatprep.subr.mxu0 0.0
    %355 = vmatpush1.msra.mxu0 0.0
    %356 = vmatprep.subr.mxu0 0.0
    %357 = vmatpush1.msra.mxu0 0.0
    %358 = vmatprep.subr.mxu0 0.0
    %359 = vmatpush1.msra.mxu0 0.0
    %360 = vmatprep.subr.mxu0 0.0
    %361 = vmatpush1.msra.mxu0 0.0
    %362 = vmatprep.subr.mxu0 0.0
    %363 = vmatpush1.msra.mxu0 0.0
    %364 = vmatprep.subr.mxu0 0.0
    %365 = vmatpush1.msra.mxu0 0.0
    %366 = vmatprep.subr.mxu0 0.0
    %367 = vmatpush1.msra.mxu0 0.0
    %368 = vmatprep.subr.mxu0 0.0
    %369 = vmatpush1.msra.mxu0 0.0
    %370 = vmatprep.subr.mxu0 0.0
    %371 = vmatpush1.msra.mxu0 0.0
    %372 = vmatprep.subr.mxu0 0.0
    %373 = vmatpush1.msra.mxu0 0.0
    %374 = vmatprep.subr.mxu0 0.0
    %375 = vmatpush1.msra.mxu0 0.0
    %376 = vmatprep.subr.mxu0 0.0
    %377 = vmatpush1.msra.mxu0 0.0
    %378 = vmatprep.subr.mxu0 0.0
    %379 = vmatpush1.msra.mxu0 0.0
    %380 = vmatprep.mubr.f32.mxu0 0.0
    %381 = vmatmul.mubr.f32.gmra.mrb[0].mxu0 %v269
    %v382 = vpop.f32.mrb[0].mxu0
    %v383 = vadd.f32 0.0, %v382
    %v384 = vpop.f32.mrb[0].mxu0
    %385 = vmatprep.mubr.f32.mxu0 0.0
    %386 = vmatmul.mubr.f32.gmra.mrb[0].mxu0 %v272
    %v387 = vpop.f32.mrb[0].mxu0
    %v388 = vadd.f32 0.0, %v387
    %v389 = vpop.f32.mrb[0].mxu0
    %390 = vmatprep.mubr.f32.mxu0 0.0
    %391 = vmatmul.mubr.f32.gmra.mrb[0].mxu0 %v275
    %v392 = vpop.f32.mrb[0].mxu0
    %v393 = vadd.f32 0.0, %v392
    %v394 = vpop.f32.mrb[0].mxu0
    %395 = vmatprep.mubr.f32.mxu0 0.0
    %396 = vmatmul.mubr.f32.gmra.mrb[0].mxu0 %v278
    %v397 = vpop.f32.mrb[0].mxu0
    %v398 = vadd.f32 0.0, %v397
    %v399 = vpop.f32.mrb[0].mxu0
    %400 = vmatprep.mubr.f32.mxu0 0.0
    %401 = vmatmul.mubr.f32.gmra.mrb[0].mxu0 %v281
    %v402 = vpop.f32.mrb[0].mxu0
    %v403 = vadd.f32 0.0, %v402
    %v404 = vpop.f32.mrb[0].mxu0
    %405 = vmatprep.mubr.f32.mxu0 0.0
    %406 = vmatmul.mubr.f32.gmra.mrb[0].mxu0 %v284
    %v407 = vpop.f32.mrb[0].mxu0
    %v408 = vadd.f32 0.0, %v407
    %v409 = vpop.f32.mrb[0].mxu0
    %410 = vmatprep.mubr.f32.mxu0 0.0
    %411 = vmatmul.mubr.f32.gmra.mrb[0].mxu0 %v287
    %v412 = vpop.f32.mrb[0].mxu0
    %v413 = vadd.f32 0.0, %v412
    %v414 = vpop.f32.mrb[0].mxu0
    %415 = vmatprep.mubr.f32.mxu0 0.0
    %416 = vmatmul.mubr.f32.gmra.mrb[0].mxu0 %v290
    %v417 = vpop.f32.mrb[0].mxu0
    %v418 = vadd.f32 0.0, %v417
    %v419 = vpop.f32.mrb[0].mxu0
    %420 = vmatprep.mubr.f32.mxu0 0.0
    %421 = vmatmul.mubr.f32.gmra.mrb[0].mxu0 %v293
    %v422 = vpop.f32.mrb[0].mxu0
    %v423 = vadd.f32 0.0, %v422
    %v424 = vpop.f32.mrb[0].mxu0
    %425 = vmatprep.mubr.f32.mxu0 0.0
    %426 = vmatmul.mubr.f32.gmra.mrb[0].mxu0 %v296
    %v427 = vpop.f32.mrb[0].mxu0
    %v428 = vadd.f32 0.0, %v427
    %v429 = vpop.f32.mrb[0].mxu0
    %430 = vmatprep.mubr.f32.mxu0 0.0
    %431 = vmatmul.mubr.f32.gmra.mrb[0].mxu0 %v299
    %v432 = vpop.f32.mrb[0].mxu0
    %v433 = vadd.f32 0.0, %v432
    %v434 = vpop.f32.mrb[0].mxu0
    %435 = vmatprep.mubr.f32.mxu0 0.0
    %436 = vmatmul.mubr.f32.gmra.mrb[0].mxu0 %v302
    %v437 = vpop.f32.mrb[0].mxu0
    %v438 = vadd.f32 0.0, %v437
    %v439 = vpop.f32.mrb[0].mxu0
    %440 = vmatprep.mubr.f32.mxu0 0.0
    %441 = vmatmul.mubr.f32.gmra.mrb[0].mxu0 %v305
    %v442 = vpop.f32.mrb[0].mxu0
    %v443 = vadd.f32 0.0, %v442
    %v444 = vpop.f32.mrb[0].mxu0
    %445 = vmatprep.mubr.f32.mxu0 0.0
    %446 = vmatmul.mubr.f32.gmra.mrb[0].mxu0 %v308
    %v447 = vpop.f32.mrb[0].mxu0
    %v448 = vadd.f32 0.0, %v447
    %v449 = vpop.f32.mrb[0].mxu0
    %450 = vmatprep.mubr.f32.mxu0 0.0
    %451 = vmatmul.mubr.f32.gmra.mrb[0].mxu0 %v311
    %v452 = vpop.f32.mrb[0].mxu0
    %v453 = vadd.f32 0.0, %v452
    %v454 = vpop.f32.mrb[0].mxu0
    %455 = vmatprep.mubr.f32.mxu0 0.0
    %456 = vmatmul.mubr.f32.gmra.mrb[0].mxu0 %v314
    %v457 = vpop.f32.mrb[0].mxu0
    %v458 = vadd.f32 0.0, %v457
    %v459 = vpop.f32.mrb[0].mxu0
    %460 = vdwg.mxu0
    %v461 = vld [vmem:[%s2] sm:$0xff]
    %v462 = vld [vmem:[%s2 + $0x8] sm:$0xff]
    %v463 = vld [vmem:[%s2 + $0x10] sm:$0xff]
    %v464 = vld [vmem:[%s2 + $0x18] sm:$0xff]
    %v465 = vld [vmem:[%s2 + $0x20] sm:$0xff]
    %v466 = vld [vmem:[%s2 + $0x28] sm:$0xff]
    %v467 = vld [vmem:[%s2 + $0x30] sm:$0xff]
    %v468 = vld [vmem:[%s2 + $0x38] sm:$0xff]
    %v469 = vld [vmem:[%s2 + $0x40] sm:$0xff]
    %v470 = vld [vmem:[%s2 + $0x48] sm:$0xff]
    %v471 = vld [vmem:[%s2 + $0x50] sm:$0xff]
    %v472 = vld [vmem:[%s2 + $0x58] sm:$0xff]
    %v473 = vld [vmem:[%s2 + $0x60] sm:$0xff]
    %v474 = vld [vmem:[%s2 + $0x68] sm:$0xff]
    %v475 = vld [vmem:[%s2 + $0x70] sm:$0xff]
    %v476 = vld [vmem:[%s2 + $0x78] sm:$0xff]
    %v478 = vsel %vm58, %v461, 0
    %v481 = vsel %vm58, %v462, 0
    %v484 = vsel %vm58, %v463, 0
    %v487 = vsel %vm58, %v464, 0
    %v490 = vsel %vm58, %v465, 0
    %v493 = vsel %vm58, %v466, 0
    %v496 = vsel %vm58, %v467, 0
    %v499 = vsel %vm58, %v468, 0
    %v502 = vsel %vm58, %v469, 0
    %v505 = vsel %vm58, %v470, 0
    %v508 = vsel %vm58, %v471, 0
    %v511 = vsel %vm58, %v472, 0
    %v514 = vsel %vm58, %v473, 0
    %v517 = vsel %vm58, %v474, 0
    %v520 = vsel %vm58, %v475, 0
    %v523 = vsel %vm58, %v476, 0
    %525 = vmatprep.subr.mxu0 0.0
    %526 = vmatpush1.msra.mxu0 %v34
    %527 = vmatprep.subr.mxu0 0.0
    %528 = vmatpush1.msra.mxu0 %v35
    %529 = vmatprep.subr.mxu0 0.0
    %530 = vmatpush1.msra.mxu0 %v36
    %531 = vmatprep.subr.mxu0 0.0
    %532 = vmatpush1.msra.mxu0 %v37
    %533 = vmatprep.subr.mxu0 0.0
    %534 = vmatpush1.msra.mxu0 %v38
    %535 = vmatprep.subr.mxu0 0.0
    %536 = vmatpush1.msra.mxu0 %v39
    %537 = vmatprep.subr.mxu0 0.0
    %538 = vmatpush1.msra.mxu0 %v40
    %539 = vmatprep.subr.mxu0 0.0
    %540 = vmatpush1.msra.mxu0 %v41
    %541 = vmatprep.subr.mxu0 0.0
    %542 = vmatpush1.msra.mxu0 0.0
    %543 = vmatprep.subr.mxu0 0.0
    %544 = vmatpush1.msra.mxu0 0.0
    %545 = vmatprep.subr.mxu0 0.0
    %546 = vmatpush1.msra.mxu0 0.0
    %547 = vmatprep.subr.mxu0 0.0
    %548 = vmatpush1.msra.mxu0 0.0
    %549 = vmatprep.subr.mxu0 0.0
    %550 = vmatpush1.msra.mxu0 0.0
    %551 = vmatprep.subr.mxu0 0.0
    %552 = vmatpush1.msra.mxu0 0.0
    %553 = vmatprep.subr.mxu0 0.0
    %554 = vmatpush1.msra.mxu0 0.0
    %555 = vmatprep.subr.mxu0 0.0
    %556 = vmatpush1.msra.mxu0 0.0
    %557 = vmatprep.subr.mxu0 0.0
    %558 = vmatpush1.msra.mxu0 0.0
    %559 = vmatprep.subr.mxu0 0.0
    %560 = vmatpush1.msra.mxu0 0.0
    %561 = vmatprep.subr.mxu0 0.0
    %562 = vmatpush1.msra.mxu0 0.0
    %563 = vmatprep.subr.mxu0 0.0
    %564 = vmatpush1.msra.mxu0 0.0
    %565 = vmatprep.subr.mxu0 0.0
    %566 = vmatpush1.msra.mxu0 0.0
    %567 = vmatprep.subr.mxu0 0.0
    %568 = vmatpush1.msra.mxu0 0.0
    %569 = vmatprep.subr.mxu0 0.0
    %570 = vmatpush1.msra.mxu0 0.0
    %571 = vmatprep.subr.mxu0 0.0
    %572 = vmatpush1.msra.mxu0 0.0
    %573 = vmatprep.subr.mxu0 0.0
    %574 = vmatpush1.msra.mxu0 0.0
    %575 = vmatprep.subr.mxu0 0.0
    %576 = vmatpush1.msra.mxu0 0.0
    %577 = vmatprep.subr.mxu0 0.0
    %578 = vmatpush1.msra.mxu0 0.0
    %579 = vmatprep.subr.mxu0 0.0
    %580 = vmatpush1.msra.mxu0 0.0
    %581 = vmatprep.subr.mxu0 0.0
    %582 = vmatpush1.msra.mxu0 0.0
    %583 = vmatprep.subr.mxu0 0.0
    %584 = vmatpush1.msra.mxu0 0.0
    %585 = vmatprep.subr.mxu0 0.0
    %586 = vmatpush1.msra.mxu0 0.0
    %587 = vmatprep.subr.mxu0 0.0
    %588 = vmatpush1.msra.mxu0 0.0
    %589 = vmatprep.mubr.f32.mxu0 0.0
    %590 = vmatmul.mubr.f32.gmra.mrb[0].mxu0 %v478
    %v591 = vpop.f32.mrb[0].mxu0
    %v592 = vadd.f32 0.0, %v591
    %v593 = vpop.f32.mrb[0].mxu0
    %594 = vmatprep.mubr.f32.mxu0 0.0
    %595 = vmatmul.mubr.f32.gmra.mrb[0].mxu0 %v481
    %v596 = vpop.f32.mrb[0].mxu0
    %v597 = vadd.f32 0.0, %v596
    %v598 = vpop.f32.mrb[0].mxu0
    %599 = vmatprep.mubr.f32.mxu0 0.0
    %600 = vmatmul.mubr.f32.gmra.mrb[0].mxu0 %v484
    %v601 = vpop.f32.mrb[0].mxu0
    %v602 = vadd.f32 0.0, %v601
    %v603 = vpop.f32.mrb[0].mxu0
    %604 = vmatprep.mubr.f32.mxu0 0.0
    %605 = vmatmul.mubr.f32.gmra.mrb[0].mxu0 %v487
    %v606 = vpop.f32.mrb[0].mxu0
    %v607 = vadd.f32 0.0, %v606
    %v608 = vpop.f32.mrb[0].mxu0
    %609 = vmatprep.mubr.f32.mxu0 0.0
    %610 = vmatmul.mubr.f32.gmra.mrb[0].mxu0 %v490
    %v611 = vpop.f32.mrb[0].mxu0
    %v612 = vadd.f32 0.0, %v611
    %v613 = vpop.f32.mrb[0].mxu0
    %614 = vmatprep.mubr.f32.mxu0 0.0
    %615 = vmatmul.mubr.f32.gmra.mrb[0].mxu0 %v493
    %v616 = vpop.f32.mrb[0].mxu0
    %v617 = vadd.f32 0.0, %v616
    %v618 = vpop.f32.mrb[0].mxu0
    %619 = vmatprep.mubr.f32.mxu0 0.0
    %620 = vmatmul.mubr.f32.gmra.mrb[0].mxu0 %v496
    %v621 = vpop.f32.mrb[0].mxu0
    %v622 = vadd.f32 0.0, %v621
    %v623 = vpop.f32.mrb[0].mxu0
    %624 = vmatprep.mubr.f32.mxu0 0.0
    %625 = vmatmul.mubr.f32.gmra.mrb[0].mxu0 %v499
    %v626 = vpop.f32.mrb[0].mxu0
    %v627 = vadd.f32 0.0, %v626
    %v628 = vpop.f32.mrb[0].mxu0
    %629 = vmatprep.mubr.f32.mxu0 0.0
    %630 = vmatmul.mubr.f32.gmra.mrb[0].mxu0 %v502
    %v631 = vpop.f32.mrb[0].mxu0
    %v632 = vadd.f32 0.0, %v631
    %v633 = vpop.f32.mrb[0].mxu0
    %634 = vmatprep.mubr.f32.mxu0 0.0
    %635 = vmatmul.mubr.f32.gmra.mrb[0].mxu0 %v505
    %v636 = vpop.f32.mrb[0].mxu0
    %v637 = vadd.f32 0.0, %v636
    %v638 = vpop.f32.mrb[0].mxu0
    %639 = vmatprep.mubr.f32.mxu0 0.0
    %640 = vmatmul.mubr.f32.gmra.mrb[0].mxu0 %v508
    %v641 = vpop.f32.mrb[0].mxu0
    %v642 = vadd.f32 0.0, %v641
    %v643 = vpop.f32.mrb[0].mxu0
    %644 = vmatprep.mubr.f32.mxu0 0.0
    %645 = vmatmul.mubr.f32.gmra.mrb[0].mxu0 %v511
    %v646 = vpop.f32.mrb[0].mxu0
    %v647 = vadd.f32 0.0, %v646
    %v648 = vpop.f32.mrb[0].mxu0
    %649 = vmatprep.mubr.f32.mxu0 0.0
    %650 = vmatmul.mubr.f32.gmra.mrb[0].mxu0 %v514
    %v651 = vpop.f32.mrb[0].mxu0
    %v652 = vadd.f32 0.0, %v651
    %v653 = vpop.f32.mrb[0].mxu0
    %654 = vmatprep.mubr.f32.mxu0 0.0
    %655 = vmatmul.mubr.f32.gmra.mrb[0].mxu0 %v517
    %v656 = vpop.f32.mrb[0].mxu0
    %v657 = vadd.f32 0.0, %v656
    %v658 = vpop.f32.mrb[0].mxu0
    %659 = vmatprep.mubr.f32.mxu0 0.0
    %660 = vmatmul.mubr.f32.gmra.mrb[0].mxu0 %v520
    %v661 = vpop.f32.mrb[0].mxu0
    %v662 = vadd.f32 0.0, %v661
    %v663 = vpop.f32.mrb[0].mxu0
    %664 = vmatprep.mubr.f32.mxu0 0.0
    %665 = vmatmul.mubr.f32.gmra.mrb[0].mxu0 %v523
    %v666 = vpop.f32.mrb[0].mxu0
    %v667 = vadd.f32 0.0, %v666
    %v668 = vpop.f32.mrb[0].mxu0
    %669 = vdwg.mxu0
    %670 = vmatprep.subr.mxu0 0.0
    %671 = vmatpush1.xpose.msra.mxu0 %v383
    %672 = vmatprep.subr.mxu0 0.0
    %673 = vmatpush1.xpose.msra.mxu0 %v388
    %674 = vmatprep.subr.mxu0 0.0
    %675 = vmatpush1.xpose.msra.mxu0 %v393
    %676 = vmatprep.subr.mxu0 0.0
    %677 = vmatpush1.xpose.msra.mxu0 %v398
    %678 = vmatprep.subr.mxu0 0.0
    %679 = vmatpush1.xpose.msra.mxu0 %v403
    %680 = vmatprep.subr.mxu0 0.0
    %681 = vmatpush1.xpose.msra.mxu0 %v408
    %682 = vmatprep.subr.mxu0 0.0
    %683 = vmatpush1.xpose.msra.mxu0 %v413
    %684 = vmatprep.subr.mxu0 0.0
    %685 = vmatpush1.xpose.msra.mxu0 %v418
    %686 = vmatprep.subr.mxu0 0.0
    %687 = vmatpush1.xpose.msra.mxu0 %v423
    %688 = vmatprep.subr.mxu0 0.0
    %689 = vmatpush1.xpose.msra.mxu0 %v428
    %690 = vmatprep.subr.mxu0 0.0
    %691 = vmatpush1.xpose.msra.mxu0 %v433
    %692 = vmatprep.subr.mxu0 0.0
    %693 = vmatpush1.xpose.msra.mxu0 %v438
    %694 = vmatprep.subr.mxu0 0.0
    %695 = vmatpush1.xpose.msra.mxu0 %v443
    %696 = vmatprep.subr.mxu0 0.0
    %697 = vmatpush1.xpose.msra.mxu0 %v448
    %698 = vmatprep.subr.mxu0 0.0
    %699 = vmatpush1.xpose.msra.mxu0 %v453
    %700 = vmatprep.subr.mxu0 0.0
    %701 = vmatpush1.xpose.msra.mxu0 %v458
    %702 = vmatprep.subr.mxu0 0.0
    %703 = vmatpush1.xpose.msra.mxu0 0.0
    %704 = vmatprep.subr.mxu0 0.0
    %705 = vmatpush1.xpose.msra.mxu0 0.0
    %706 = vmatprep.subr.mxu0 0.0
    %707 = vmatpush1.xpose.msra.mxu0 0.0
    %708 = vmatprep.subr.mxu0 0.0
    %709 = vmatpush1.xpose.msra.mxu0 0.0
    %710 = vmatprep.subr.mxu0 0.0
    %711 = vmatpush1.xpose.msra.mxu0 0.0
    %712 = vmatprep.subr.mxu0 0.0
    %713 = vmatpush1.xpose.msra.mxu0 0.0
    %714 = vmatprep.subr.mxu0 0.0
    %715 = vmatpush1.xpose.msra.mxu0 0.0
    %716 = vmatprep.subr.mxu0 0.0
    %717 = vmatpush1.xpose.msra.mxu0 0.0
    %718 = vmatprep.subr.mxu0 0.0
    %719 = vmatpush1.xpose.msra.mxu0 0.0
    %720 = vmatprep.subr.mxu0 0.0
    %721 = vmatpush1.xpose.msra.mxu0 0.0
    %722 = vmatprep.subr.mxu0 0.0
    %723 = vmatpush1.xpose.msra.mxu0 0.0
    %724 = vmatprep.subr.mxu0 0.0
    %725 = vmatpush1.xpose.msra.mxu0 0.0
    %726 = vmatprep.subr.mxu0 0.0
    %727 = vmatpush1.xpose.msra.mxu0 0.0
    %728 = vmatprep.subr.mxu0 0.0
    %729 = vmatpush1.xpose.msra.mxu0 0.0
    %730 = vmatprep.subr.mxu0 0.0
    %731 = vmatpush1.xpose.msra.mxu0 0.0
    %732 = vmatprep.subr.mxu0 0.0
    %733 = vmatpush1.xpose.msra.mxu0 0.0
    %734 = vmatprep.mubr.f32.mxu0 0.0
    %735 = vmatmul.mubr.f32.gmra.mrb[0].mxu0 %v174
    %v736 = vpop.f32.mrb[0].mxu0
    %v737 = vadd.f32 0.0, %v736
    %v738 = vpop.f32.mrb[0].mxu0
    %739 = vmatprep.mubr.f32.mxu0 0.0
    %740 = vmatmul.mubr.f32.gmra.mrb[0].mxu0 %v179
    %v741 = vpop.f32.mrb[0].mxu0
    %v742 = vadd.f32 0.0, %v741
    %v743 = vpop.f32.mrb[0].mxu0
    %744 = vmatprep.mubr.f32.mxu0 0.0
    %745 = vmatmul.mubr.f32.gmra.mrb[0].mxu0 %v184
    %v746 = vpop.f32.mrb[0].mxu0
    %v747 = vadd.f32 0.0, %v746
    %v748 = vpop.f32.mrb[0].mxu0
    %749 = vmatprep.mubr.f32.mxu0 0.0
    %750 = vmatmul.mubr.f32.gmra.mrb[0].mxu0 %v189
    %v751 = vpop.f32.mrb[0].mxu0
    %v752 = vadd.f32 0.0, %v751
    %v753 = vpop.f32.mrb[0].mxu0
    %754 = vmatprep.mubr.f32.mxu0 0.0
    %755 = vmatmul.mubr.f32.gmra.mrb[0].mxu0 %v194
    %v756 = vpop.f32.mrb[0].mxu0
    %v757 = vadd.f32 0.0, %v756
    %v758 = vpop.f32.mrb[0].mxu0
    %759 = vmatprep.mubr.f32.mxu0 0.0
    %760 = vmatmul.mubr.f32.gmra.mrb[0].mxu0 %v199
    %v761 = vpop.f32.mrb[0].mxu0
    %v762 = vadd.f32 0.0, %v761
    %v763 = vpop.f32.mrb[0].mxu0
    %764 = vmatprep.mubr.f32.mxu0 0.0
    %765 = vmatmul.mubr.f32.gmra.mrb[0].mxu0 %v204
    %v766 = vpop.f32.mrb[0].mxu0
    %v767 = vadd.f32 0.0, %v766
    %v768 = vpop.f32.mrb[0].mxu0
    %769 = vmatprep.mubr.f32.mxu0 0.0
    %770 = vmatmul.mubr.f32.gmra.mrb[0].mxu0 %v209
    %v771 = vpop.f32.mrb[0].mxu0
    %v772 = vadd.f32 0.0, %v771
    %v773 = vpop.f32.mrb[0].mxu0
    %774 = vmatprep.mubr.f32.mxu0 0.0
    %775 = vmatmul.mubr.f32.gmra.mrb[0].mxu0 %v214
    %v776 = vpop.f32.mrb[0].mxu0
    %v777 = vadd.f32 0.0, %v776
    %v778 = vpop.f32.mrb[0].mxu0
    %779 = vmatprep.mubr.f32.mxu0 0.0
    %780 = vmatmul.mubr.f32.gmra.mrb[0].mxu0 %v219
    %v781 = vpop.f32.mrb[0].mxu0
    %v782 = vadd.f32 0.0, %v781
    %v783 = vpop.f32.mrb[0].mxu0
    %784 = vmatprep.mubr.f32.mxu0 0.0
    %785 = vmatmul.mubr.f32.gmra.mrb[0].mxu0 %v224
    %v786 = vpop.f32.mrb[0].mxu0
    %v787 = vadd.f32 0.0, %v786
    %v788 = vpop.f32.mrb[0].mxu0
    %789 = vmatprep.mubr.f32.mxu0 0.0
    %790 = vmatmul.mubr.f32.gmra.mrb[0].mxu0 %v229
    %v791 = vpop.f32.mrb[0].mxu0
    %v792 = vadd.f32 0.0, %v791
    %v793 = vpop.f32.mrb[0].mxu0
    %794 = vmatprep.mubr.f32.mxu0 0.0
    %795 = vmatmul.mubr.f32.gmra.mrb[0].mxu0 %v234
    %v796 = vpop.f32.mrb[0].mxu0
    %v797 = vadd.f32 0.0, %v796
    %v798 = vpop.f32.mrb[0].mxu0
    %799 = vmatprep.mubr.f32.mxu0 0.0
    %800 = vmatmul.mubr.f32.gmra.mrb[0].mxu0 %v239
    %v801 = vpop.f32.mrb[0].mxu0
    %v802 = vadd.f32 0.0, %v801
    %v803 = vpop.f32.mrb[0].mxu0
    %804 = vmatprep.mubr.f32.mxu0 0.0
    %805 = vmatmul.mubr.f32.gmra.mrb[0].mxu0 %v244
    %v806 = vpop.f32.mrb[0].mxu0
    %v807 = vadd.f32 0.0, %v806
    %v808 = vpop.f32.mrb[0].mxu0
    %809 = vmatprep.mubr.f32.mxu0 0.0
    %810 = vmatmul.mubr.f32.gmra.mrb[0].mxu0 %v249
    %v811 = vpop.f32.mrb[0].mxu0
    %v812 = vadd.f32 0.0, %v811
    %v813 = vpop.f32.mrb[0].mxu0
    %814 = vdwg.mxu0
    %815 = vmax.xlane.f32.xlu0 %v737
    %v816 = vpop.xlane.xlu0 %815
    %817 = vmax.xlane.f32.xlu0 %v742
    %v818 = vpop.xlane.xlu0 %817
    %819 = vmax.xlane.f32.xlu0 %v747
    %v820 = vpop.xlane.xlu0 %819
    %821 = vmax.xlane.f32.xlu0 %v752
    %v822 = vpop.xlane.xlu0 %821
    %823 = vmax.xlane.f32.xlu0 %v757
    %v824 = vpop.xlane.xlu0 %823
    %825 = vmax.xlane.f32.xlu0 %v762
    %v826 = vpop.xlane.xlu0 %825
    %827 = vmax.xlane.f32.xlu0 %v767
    %v828 = vpop.xlane.xlu0 %827
    %829 = vmax.xlane.f32.xlu0 %v772
    %v830 = vpop.xlane.xlu0 %829
    %831 = vmax.xlane.f32.xlu0 %v777
    %v832 = vpop.xlane.xlu0 %831
    %833 = vmax.xlane.f32.xlu0 %v782
    %v834 = vpop.xlane.xlu0 %833
    %835 = vmax.xlane.f32.xlu0 %v787
    %v836 = vpop.xlane.xlu0 %835
    %837 = vmax.xlane.f32.xlu0 %v792
    %v838 = vpop.xlane.xlu0 %837
    %839 = vmax.xlane.f32.xlu0 %v797
    %v840 = vpop.xlane.xlu0 %839
    %841 = vmax.xlane.f32.xlu0 %v802
    %v842 = vpop.xlane.xlu0 %841
    %843 = vmax.xlane.f32.xlu0 %v807
    %v844 = vpop.xlane.xlu0 %843
    %845 = vmax.xlane.f32.xlu0 %v812
    %v846 = vpop.xlane.xlu0 %845
    %v847 = vsub.f32 %v737, %v816
    %v848 = vsub.f32 %v742, %v818
    %v849 = vsub.f32 %v747, %v820
    %v850 = vsub.f32 %v752, %v822
    %v851 = vsub.f32 %v757, %v824
    %v852 = vsub.f32 %v762, %v826
    %v853 = vsub.f32 %v767, %v828
    %v854 = vsub.f32 %v772, %v830
    %v855 = vsub.f32 %v777, %v832
    %v856 = vsub.f32 %v782, %v834
    %v857 = vsub.f32 %v787, %v836
    %v858 = vsub.f32 %v792, %v838
    %v859 = vsub.f32 %v797, %v840
    %v860 = vsub.f32 %v802, %v842
    %v861 = vsub.f32 %v807, %v844
    %v862 = vsub.f32 %v812, %v846
    %v863 = vmul.f32 %v847, 1.442695
    %v864 = vpow.pop %v863
    %v865 = vmul.f32 %v848, 1.442695
    %v866 = vpow.pop %v865
    %v867 = vmul.f32 %v849, 1.442695
    %v868 = vpow.pop %v867
    %v869 = vmul.f32 %v850, 1.442695
    %v870 = vpow.pop %v869
    %v871 = vmul.f32 %v851, 1.442695
    %v872 = vpow.pop %v871
    %v873 = vmul.f32 %v852, 1.442695
    %v874 = vpow.pop %v873
    %v875 = vmul.f32 %v853, 1.442695
    %v876 = vpow.pop %v875
    %v877 = vmul.f32 %v854, 1.442695
    %v878 = vpow.pop %v877
    %v879 = vmul.f32 %v855, 1.442695
    %v880 = vpow.pop %v879
    %v881 = vmul.f32 %v856, 1.442695
    %v882 = vpow.pop %v881
    %v883 = vmul.f32 %v857, 1.442695
    %v884 = vpow.pop %v883
    %v885 = vmul.f32 %v858, 1.442695
    %v886 = vpow.pop %v885
    %v887 = vmul.f32 %v859, 1.442695
    %v888 = vpow.pop %v887
    %v889 = vmul.f32 %v860, 1.442695
    %v890 = vpow.pop %v889
    %v891 = vmul.f32 %v861, 1.442695
    %v892 = vpow.pop %v891
    %v893 = vmul.f32 %v862, 1.442695
    %v894 = vpow.pop %v893
    %895 = vadd.xlane.f32.xlu0 %v864
    %v896 = vpop.xlane.xlu0 %895
    %897 = vadd.xlane.f32.xlu0 %v866
    %v898 = vpop.xlane.xlu0 %897
    %899 = vadd.xlane.f32.xlu0 %v868
    %v900 = vpop.xlane.xlu0 %899
    %901 = vadd.xlane.f32.xlu0 %v870
    %v902 = vpop.xlane.xlu0 %901
    %903 = vadd.xlane.f32.xlu0 %v872
    %v904 = vpop.xlane.xlu0 %903
    %905 = vadd.xlane.f32.xlu0 %v874
    %v906 = vpop.xlane.xlu0 %905
    %907 = vadd.xlane.f32.xlu0 %v876
    %v908 = vpop.xlane.xlu0 %907
    %909 = vadd.xlane.f32.xlu0 %v878
    %v910 = vpop.xlane.xlu0 %909
    %911 = vadd.xlane.f32.xlu0 %v880
    %v912 = vpop.xlane.xlu0 %911
    %913 = vadd.xlane.f32.xlu0 %v882
    %v914 = vpop.xlane.xlu0 %913
    %915 = vadd.xlane.f32.xlu0 %v884
    %v916 = vpop.xlane.xlu0 %915
    %917 = vadd.xlane.f32.xlu0 %v886
    %v918 = vpop.xlane.xlu0 %917
    %919 = vadd.xlane.f32.xlu0 %v888
    %v920 = vpop.xlane.xlu0 %919
    %921 = vadd.xlane.f32.xlu0 %v890
    %v922 = vpop.xlane.xlu0 %921
    %923 = vadd.xlane.f32.xlu0 %v892
    %v924 = vpop.xlane.xlu0 %923
    %925 = vadd.xlane.f32.xlu0 %v894
    %v926 = vpop.xlane.xlu0 %925
    %v927 = vrcp.pop %v896
    %v928 = vmul.f32 1.0, %v927
    %v929 = vrcp.pop %v898
    %v930 = vmul.f32 1.0, %v929
    %v931 = vrcp.pop %v900
    %v932 = vmul.f32 1.0, %v931
    %v933 = vrcp.pop %v902
    %v934 = vmul.f32 1.0, %v933
    %v935 = vrcp.pop %v904
    %v936 = vmul.f32 1.0, %v935
    %v937 = vrcp.pop %v906
    %v938 = vmul.f32 1.0, %v937
    %v939 = vrcp.pop %v908
    %v940 = vmul.f32 1.0, %v939
    %v941 = vrcp.pop %v910
    %v942 = vmul.f32 1.0, %v941
    %v943 = vrcp.pop %v912
    %v944 = vmul.f32 1.0, %v943
    %v945 = vrcp.pop %v914
    %v946 = vmul.f32 1.0, %v945
    %v947 = vrcp.pop %v916
    %v948 = vmul.f32 1.0, %v947
    %v949 = vrcp.pop %v918
    %v950 = vmul.f32 1.0, %v949
    %v951 = vrcp.pop %v920
    %v952 = vmul.f32 1.0, %v951
    %v953 = vrcp.pop %v922
    %v954 = vmul.f32 1.0, %v953
    %v955 = vrcp.pop %v924
    %v956 = vmul.f32 1.0, %v955
    %v957 = vrcp.pop %v926
    %v958 = vmul.f32 1.0, %v957
    %v959 = vmul.f32 %v864, %v928
    %v960 = vmul.f32 %v866, %v930
    %v961 = vmul.f32 %v868, %v932
    %v962 = vmul.f32 %v870, %v934
    %v963 = vmul.f32 %v872, %v936
    %v964 = vmul.f32 %v874, %v938
    %v965 = vmul.f32 %v876, %v940
    %v966 = vmul.f32 %v878, %v942
    %v967 = vmul.f32 %v880, %v944
    %v968 = vmul.f32 %v882, %v946
    %v969 = vmul.f32 %v884, %v948
    %v970 = vmul.f32 %v886, %v950
    %v971 = vmul.f32 %v888, %v952
    %v972 = vmul.f32 %v890, %v954
    %v973 = vmul.f32 %v892, %v956
    %v974 = vmul.f32 %v894, %v958
    %975 = vmatprep.subr.mxu0 0.0
    %976 = vmatpush1.msra.mxu0 %v592
    %977 = vmatprep.subr.mxu0 0.0
    %978 = vmatpush1.msra.mxu0 %v597
    %979 = vmatprep.subr.mxu0 0.0
    %980 = vmatpush1.msra.mxu0 %v602
    %981 = vmatprep.subr.mxu0 0.0
    %982 = vmatpush1.msra.mxu0 %v607
    %983 = vmatprep.subr.mxu0 0.0
    %984 = vmatpush1.msra.mxu0 %v612
    %985 = vmatprep.subr.mxu0 0.0
    %986 = vmatpush1.msra.mxu0 %v617
    %987 = vmatprep.subr.mxu0 0.0
    %988 = vmatpush1.msra.mxu0 %v622
    %989 = vmatprep.subr.mxu0 0.0
    %990 = vmatpush1.msra.mxu0 %v627
    %991 = vmatprep.subr.mxu0 0.0
    %992 = vmatpush1.msra.mxu0 %v632
    %993 = vmatprep.subr.mxu0 0.0
    %994 = vmatpush1.msra.mxu0 %v637
    %995 = vmatprep.subr.mxu0 0.0
    %996 = vmatpush1.msra.mxu0 %v642
    %997 = vmatprep.subr.mxu0 0.0
    %998 = vmatpush1.msra.mxu0 %v647
    %999 = vmatprep.subr.mxu0 0.0
    %1000 = vmatpush1.msra.mxu0 %v652
    %1001 = vmatprep.subr.mxu0 0.0
    %1002 = vmatpush1.msra.mxu0 %v657
    %1003 = vmatprep.subr.mxu0 0.0
    %1004 = vmatpush1.msra.mxu0 %v662
    %1005 = vmatprep.subr.mxu0 0.0
    %1006 = vmatpush1.msra.mxu0 %v667
    %1007 = vmatprep.subr.mxu0 0.0
    %1008 = vmatpush1.msra.mxu0 0.0
    %1009 = vmatprep.subr.mxu0 0.0
    %1010 = vmatpush1.msra.mxu0 0.0
    %1011 = vmatprep.subr.mxu0 0.0
    %1012 = vmatpush1.msra.mxu0 0.0
    %1013 = vmatprep.subr.mxu0 0.0
    %1014 = vmatpush1.msra.mxu0 0.0
    %1015 = vmatprep.subr.mxu0 0.0
    %1016 = vmatpush1.msra.mxu0 0.0
    %1017 = vmatprep.subr.mxu0 0.0
    %1018 = vmatpush1.msra.mxu0 0.0
    %1019 = vmatprep.subr.mxu0 0.0
    %1020 = vmatpush1.msra.mxu0 0.0
    %1021 = vmatprep.subr.mxu0 0.0
    %1022 = vmatpush1.msra.mxu0 0.0
    %1023 = vmatprep.subr.mxu0 0.0
    %1024 = vmatpush1.msra.mxu0 0.0
    %1025 = vmatprep.subr.mxu0 0.0
    %1026 = vmatpush1.msra.mxu0 0.0
    %1027 = vmatprep.subr.mxu0 0.0
    %1028 = vmatpush1.msra.mxu0 0.0
    %1029 = vmatprep.subr.mxu0 0.0
    %1030 = vmatpush1.msra.mxu0 0.0
    %1031 = vmatprep.subr.mxu0 0.0
    %1032 = vmatpush1.msra.mxu0 0.0
    %1033 = vmatprep.subr.mxu0 0.0
    %1034 = vmatpush1.msra.mxu0 0.0
    %1035 = vmatprep.subr.mxu0 0.0
    %1036 = vmatpush1.msra.mxu0 0.0
    %1037 = vmatprep.subr.mxu0 0.0
    %1038 = vmatpush1.msra.mxu0 0.0
    %1039 = vmatprep.mubr.f32.mxu0 0.0
    %1040 = vmatmul.mubr.f32.gmra.mrb[0].mxu0 %v959
    %v1041 = vpop.f32.mrb[0].mxu0
    %v1042 = vadd.f32 0.0, %v1041
    %v1043 = vpop.f32.mrb[0].mxu0
    %1044 = vmatprep.mubr.f32.mxu0 0.0
    %1045 = vmatmul.mubr.f32.gmra.mrb[0].mxu0 %v960
    %v1046 = vpop.f32.mrb[0].mxu0
    %v1047 = vadd.f32 0.0, %v1046
    %v1048 = vpop.f32.mrb[0].mxu0
    %1049 = vmatprep.mubr.f32.mxu0 0.0
    %1050 = vmatmul.mubr.f32.gmra.mrb[0].mxu0 %v961
    %v1051 = vpop.f32.mrb[0].mxu0
    %v1052 = vadd.f32 0.0, %v1051
    %v1053 = vpop.f32.mrb[0].mxu0
    %1054 = vmatprep.mubr.f32.mxu0 0.0
    %1055 = vmatmul.mubr.f32.gmra.mrb[0].mxu0 %v962
    %v1056 = vpop.f32.mrb[0].mxu0
    %v1057 = vadd.f32 0.0, %v1056
    %v1058 = vpop.f32.mrb[0].mxu0
    %1059 = vmatprep.mubr.f32.mxu0 0.0
    %1060 = vmatmul.mubr.f32.gmra.mrb[0].mxu0 %v963
    %v1061 = vpop.f32.mrb[0].mxu0
    %v1062 = vadd.f32 0.0, %v1061
    %v1063 = vpop.f32.mrb[0].mxu0
    %1064 = vmatprep.mubr.f32.mxu0 0.0
    %1065 = vmatmul.mubr.f32.gmra.mrb[0].mxu0 %v964
    %v1066 = vpop.f32.mrb[0].mxu0
    %v1067 = vadd.f32 0.0, %v1066
    %v1068 = vpop.f32.mrb[0].mxu0
    %1069 = vmatprep.mubr.f32.mxu0 0.0
    %1070 = vmatmul.mubr.f32.gmra.mrb[0].mxu0 %v965
    %v1071 = vpop.f32.mrb[0].mxu0
    %v1072 = vadd.f32 0.0, %v1071
    %v1073 = vpop.f32.mrb[0].mxu0
    %1074 = vmatprep.mubr.f32.mxu0 0.0
    %1075 = vmatmul.mubr.f32.gmra.mrb[0].mxu0 %v966
    %v1076 = vpop.f32.mrb[0].mxu0
    %v1077 = vadd.f32 0.0, %v1076
    %v1078 = vpop.f32.mrb[0].mxu0
    %1079 = vmatprep.mubr.f32.mxu0 0.0
    %1080 = vmatmul.mubr.f32.gmra.mrb[0].mxu0 %v967
    %v1081 = vpop.f32.mrb[0].mxu0
    %v1082 = vadd.f32 0.0, %v1081
    %v1083 = vpop.f32.mrb[0].mxu0
    %1084 = vmatprep.mubr.f32.mxu0 0.0
    %1085 = vmatmul.mubr.f32.gmra.mrb[0].mxu0 %v968
    %v1086 = vpop.f32.mrb[0].mxu0
    %v1087 = vadd.f32 0.0, %v1086
    %v1088 = vpop.f32.mrb[0].mxu0
    %1089 = vmatprep.mubr.f32.mxu0 0.0
    %1090 = vmatmul.mubr.f32.gmra.mrb[0].mxu0 %v969
    %v1091 = vpop.f32.mrb[0].mxu0
    %v1092 = vadd.f32 0.0, %v1091
    %v1093 = vpop.f32.mrb[0].mxu0
    %1094 = vmatprep.mubr.f32.mxu0 0.0
    %1095 = vmatmul.mubr.f32.gmra.mrb[0].mxu0 %v970
    %v1096 = vpop.f32.mrb[0].mxu0
    %v1097 = vadd.f32 0.0, %v1096
    %v1098 = vpop.f32.mrb[0].mxu0
    %1099 = vmatprep.mubr.f32.mxu0 0.0
    %1100 = vmatmul.mubr.f32.gmra.mrb[0].mxu0 %v971
    %v1101 = vpop.f32.mrb[0].mxu0
    %v1102 = vadd.f32 0.0, %v1101
    %v1103 = vpop.f32.mrb[0].mxu0
    %1104 = vmatprep.mubr.f32.mxu0 0.0
    %1105 = vmatmul.mubr.f32.gmra.mrb[0].mxu0 %v972
    %v1106 = vpop.f32.mrb[0].mxu0
    %v1107 = vadd.f32 0.0, %v1106
    %v1108 = vpop.f32.mrb[0].mxu0
    %1109 = vmatprep.mubr.f32.mxu0 0.0
    %1110 = vmatmul.mubr.f32.gmra.mrb[0].mxu0 %v973
    %v1111 = vpop.f32.mrb[0].mxu0
    %v1112 = vadd.f32 0.0, %v1111
    %v1113 = vpop.f32.mrb[0].mxu0
    %1114 = vmatprep.mubr.f32.mxu0 0.0
    %1115 = vmatmul.mubr.f32.gmra.mrb[0].mxu0 %v974
    %v1116 = vpop.f32.mrb[0].mxu0
    %v1117 = vadd.f32 0.0, %v1116
    %v1118 = vpop.f32.mrb[0].mxu0
    %1119 = vdwg.mxu0
    %1120 = vst [vmem:[#allocation2] sm:$0xff] %v1042
    %1121 = vst [vmem:[#allocation2 + $0x8] sm:$0xff] %v1047
    %1122 = vst [vmem:[#allocation2 + $0x10] sm:$0xff] %v1052
    %1123 = vst [vmem:[#allocation2 + $0x18] sm:$0xff] %v1057
    %1124 = vst [vmem:[#allocation2 + $0x20] sm:$0xff] %v1062
    %1125 = vst [vmem:[#allocation2 + $0x28] sm:$0xff] %v1067
    %1126 = vst [vmem:[#allocation2 + $0x30] sm:$0xff] %v1072
    %1127 = vst [vmem:[#allocation2 + $0x38] sm:$0xff] %v1077
    %1128 = vst [vmem:[#allocation2 + $0x40] sm:$0xff] %v1082
    %1129 = vst [vmem:[#allocation2 + $0x48] sm:$0xff] %v1087
    %1130 = vst [vmem:[#allocation2 + $0x50] sm:$0xff] %v1092
    %1131 = vst [vmem:[#allocation2 + $0x58] sm:$0xff] %v1097
    %1132 = vst [vmem:[#allocation2 + $0x60] sm:$0xff] %v1102
    %1133 = vst [vmem:[#allocation2 + $0x68] sm:$0xff] %v1107
    %1134 = vst [vmem:[#allocation2 + $0x70] sm:$0xff] %v1112
    %1135 = vst [vmem:[#allocation2 + $0x78] sm:$0xff] %v1117
    // Predicated region
    $region18: #{tpu_custom_call.1} parent=1 // pred_check
      _
    $region19: #{tpu_custom_call.1} parent=1 // pred_check_branch
      %1137 = sbr.rel (0) target = $region21
    $region20: #{tpu_custom_call.1} parent=1 // pred_region
      %s1139 = ssub.s32 2048, 2048
      %1140 = vsyncadd [#allocation3], %s1139
      %s1141 = sshll.u32 [#allocation2], 4
      %s1142 = int_to_ptr.vmem [resolvable:$true] %s1141
      %1147 = dma.vmem_to_hbm [thread:$0]  %s1142, 2048, %s4, [#allocation3], 128, 128, 8
    $region21: #{tpu_custom_call.1} parent=1 // pred_fallthru
      _
    // Predicated region
    $region22: #{tpu_custom_call.1} parent=1 // pred_check
      _
    $region23: #{tpu_custom_call.1} parent=1 // pred_check_branch
      %1149 = sbr.rel (0) target = $region25
    $region24: #{tpu_custom_call.1} parent=1 // pred_region
      %1150 = dma.done [#allocation3], 2048
    $region25: #{tpu_custom_call.1} parent=1 // pred_fallthru
      _
    %1151 = vsyncpa [#allocation3], 1

</llo_original>
